<compile_context>
chip_gen: v5e
topology: v5e:2x2
jax: 0.10.0
libtpu: 0.0.40
codegen_flags: <defaults>
</compile_context>

<pallas_src>
import jax
import jax.numpy as jnp
from jax import lax
from jax.experimental import pallas as pl
from jax.experimental.pallas import tpu as pltpu

LANE = 128


def _make_kernel(r_total: int, tile_rows: int):
    """r_total / tile_rows are static Python ints baked into the kernel."""

    def kernel(p_ref, t_ref, w_ref, out_ref):
        # refs: p/t (1, C, TR, 128), w (1, 1, TR, 128), out (1, TR, 128)
        j = pl.program_id(1)

        @pl.when(j == 0)
        def _():
            out_ref[...] = jnp.zeros_like(out_ref)

        p = p_ref[0].astype(jnp.float32)       # (C, TR, 128)
        t = t_ref[0].astype(jnp.float32)       # (C, TR, 128)
        w = w_ref[0, 0].astype(jnp.float32)    # (TR, 128)

        # Channel reduction over the leading axis: C-1 dense VPU adds (no XLU).
        ch_sum = jnp.sum(jnp.abs(p - t), axis=0)        # (TR, 128)
        err = w * ch_sum                                # (TR, 128)

        # Mask the tail row-tile (only emitted when tiles don't divide R).
        if r_total % tile_rows != 0:
            rows = j * tile_rows + lax.broadcasted_iota(
                jnp.int32, (tile_rows, LANE), 0)
            err = jnp.where(rows < r_total, err, 0.0)

        # Element-wise accumulate into the resident per-batch output block.
        out_ref[0] += err

    return kernel


def weighted_normals_loss(pred, target, weight, *, tile_rows=64):
    """pred/target: (B, C, H, W); weight: (B, 1, H, W). Returns scalar f32 loss."""
    B, C, H, W = pred.shape
    HW = H * W
    N = B * HW  # element count of the broadcast `error` tensor (B, 1, H, W)

    # ---- layout: reshape only (no transposes / extra HBM passes) -------------
    p = pred.reshape(B, C, HW)
    t = target.reshape(B, C, HW)
    w = weight.reshape(B, 1, HW)

    lane_pad = (-HW) % LANE
    if lane_pad:  # rare fallback; zero padding contributes exactly 0 to the sum
        padc = ((0, 0), (0, 0), (0, lane_pad))
        p, t, w = jnp.pad(p, padc), jnp.pad(t, padc), jnp.pad(w, padc)
    R = (HW + lane_pad) // LANE

    p = p.reshape(B, C, R, LANE)
    t = t.reshape(B, C, R, LANE)
    w = w.reshape(B, 1, R, LANE)

    # ---- tile selection -------------------------------------------------------
    # Keep one pred block <= ~4 MiB even for large channel counts.
    rows_cap = max(8, ((4 * 1024 * 1024) // (C * LANE * 4) // 8) * 8)
    tr_req = min(tile_rows, rows_cap)
    if R <= tr_req:
        tr = R                           # single row-tile: block == full extent
    else:
        tr = max(8, (tr_req // 8) * 8)   # (8,128)-aligned tiles + masked tail
    num_tiles = pl.cdiv(R, tr)

    kernel = _make_kernel(R, tr)

    partials = pl.pallas_call(
        kernel,
        out_shape=jax.ShapeDtypeStruct((B, tr, LANE), jnp.float32),
        grid_spec=pltpu.PrefetchScalarGridSpec(
            num_scalar_prefetch=0,
            grid=(B, num_tiles),
            in_specs=[
                pl.BlockSpec((1, C, tr, LANE), lambda b, j: (b, 0, j, 0)),
                pl.BlockSpec((1, C, tr, LANE), lambda b, j: (b, 0, j, 0)),
                pl.BlockSpec((1, 1, tr, LANE), lambda b, j: (b, 0, j, 0)),
            ],
            out_specs=pl.BlockSpec((1, tr, LANE), lambda b, j: (b, 0, 0)),
        ),
        compiler_params=pltpu.CompilerParams(
            # batch axis parallel (per-batch partials -> safe across TCs on v7x),
            # row-tile reduction axis arbitrary (resident accumulator).
            dimension_semantics=("parallel", "arbitrary"),
            vmem_limit_bytes=32 * 1024 * 1024,  # explicit, safe on v5e/v6e/v7x
        ),
    )(p, t, w)

    # Final cross-lane reduce + mean on the tiny partials (plain XLA).
    return jnp.sum(partials) / jnp.float32(N)


def _reference(pred, target, weight):
    error = weight * jnp.sum(jnp.abs(pred - target), axis=1, keepdims=True)
    return jnp.mean(error)


if __name__ == "__main__":
    key = jax.random.PRNGKey(0)

    # Main check: the module's nominal small shapes.
    k1, k2, k3, k4, k5, k6 = jax.random.split(key, 6)
    B, C, H, W = 2, 4, 16, 16
    pred = jax.random.normal(k1, (B, C, H, W), dtype=jnp.float32)
    target = jax.random.normal(k2, (B, C, H, W), dtype=jnp.float32)
    weight = jax.random.uniform(k3, (B, 1, H, W), dtype=jnp.float32)

    loss = jax.block_until_ready(weighted_normals_loss(pred, target, weight))
    ref = jax.block_until_ready(_reference(pred, target, weight))
    assert jnp.allclose(loss, ref, rtol=1e-5, atol=1e-5), (loss, ref)

    # Second check: exercises multi-tile accumulation + tail-row masking
    # (R = 18 rows, tile_rows = 8 -> 3 tiles, last one partial).
    B2, C2, H2, W2 = 2, 3, 48, 48
    pred2 = jax.random.normal(k4, (B2, C2, H2, W2), dtype=jnp.float32)
    target2 = jax.random.normal(k5, (B2, C2, H2, W2), dtype=jnp.float32)
    weight2 = jax.random.uniform(k6, (B2, 1, H2, W2), dtype=jnp.float32)

    loss2 = jax.block_until_ready(
        weighted_normals_loss(pred2, target2, weight2, tile_rows=8))
    ref2 = jax.block_until_ready(_reference(pred2, target2, weight2))
    assert jnp.allclose(loss2, ref2, rtol=1e-5, atol=1e-5), (loss2, ref2)

    print("KERNEL_OK")
</pallas_src>

<mosaic_0001>
module attributes {stable_mosaic.version = 11 : i64} {
  func.func @kernel(%arg0: i32, %arg1: i32, %arg2: memref<1x4x2x128xf32, #tpu.memory_space<vmem>>, %arg3: memref<1x4x2x128xf32, #tpu.memory_space<vmem>>, %arg4: memref<1x1x2x128xf32, #tpu.memory_space<vmem>>, %arg5: memref<1x2x128xf32, #tpu.memory_space<vmem>>) attributes {dimension_semantics = [#tpu.dimension_semantics<parallel>, #tpu.dimension_semantics<arbitrary>], iteration_bounds = array<i64: 2, 1>, scalar_prefetch = 0 : i64, scratch_operands = 0 : i64, tpu.core_type = #tpu.core_type<tc>, window_params = [{transform_indices = @transform_0, window_bounds = array<i64: 1, 4, 2, 128>}, {transform_indices = @transform_1, window_bounds = array<i64: 1, 4, 2, 128>}, {transform_indices = @transform_2, window_bounds = array<i64: 1, 1, 2, 128>}, {transform_indices = @transform_3, window_bounds = array<i64: 1, 2, 128>}]} {
    %c0_i32 = arith.constant 0 : i32
    %0 = arith.cmpi eq, %arg1, %c0_i32 : i32
    %1 = arith.extui %0 : i1 to i32
    %c0_i32_0 = arith.constant 0 : i32
    %2 = arith.cmpi ne, %1, %c0_i32_0 : i32
    scf.if %2 {
      %cst_18 = arith.constant 0.000000e+00 : f32
      %19 = vector.broadcast %cst_18 : f32 to vector<1x2x128xf32>
      %c0_19 = arith.constant 0 : index
      %c0_20 = arith.constant 0 : index
      %c0_21 = arith.constant 0 : index
      %20 = vector.load %arg5[%c0_19, %c0_20, %c0_21] : memref<1x2x128xf32, #tpu.memory_space<vmem>>, vector<1x2x128xf32>
      tpu.vector_store %arg5[%c0_19, %c0_20, %c0_21], %19 {strides = array<i32>} : memref<1x2x128xf32, #tpu.memory_space<vmem>>, vector<1x2x128xf32>,
    } else {
    }
    %c0 = arith.constant 0 : index
    %c0_1 = arith.constant 0 : index
    %c0_2 = arith.constant 0 : index
    %c0_3 = arith.constant 0 : index
    %3 = vector.load %arg2[%c0, %c0_1, %c0_2, %c0_3] : memref<1x4x2x128xf32, #tpu.memory_space<vmem>>, vector<1x4x2x128xf32>
    %4 = vector.shape_cast %3 : vector<1x4x2x128xf32> to vector<4x2x128xf32>
    %c0_4 = arith.constant 0 : index
    %c0_5 = arith.constant 0 : index
    %c0_6 = arith.constant 0 : index
    %c0_7 = arith.constant 0 : index
    %5 = vector.load %arg3[%c0_4, %c0_5, %c0_6, %c0_7] : memref<1x4x2x128xf32, #tpu.memory_space<vmem>>, vector<1x4x2x128xf32>
    %6 = vector.shape_cast %5 : vector<1x4x2x128xf32> to vector<4x2x128xf32>
    %c0_8 = arith.constant 0 : index
    %c0_9 = arith.constant 0 : index
    %c0_10 = arith.constant 0 : index
    %c0_11 = arith.constant 0 : index
    %7 = vector.load %arg4[%c0_8, %c0_9, %c0_10, %c0_11] : memref<1x1x2x128xf32, #tpu.memory_space<vmem>>, vector<1x1x2x128xf32>
    %8 = vector.shape_cast %7 : vector<1x1x2x128xf32> to vector<2x128xf32>
    %9 = arith.subf %4, %6 : vector<4x2x128xf32>
    %10 = math.absf %9 : vector<4x2x128xf32>
    %cst = arith.constant dense<0.000000e+00> : vector<2x128xf32>
    %11 = vector.multi_reduction <add>, %10, %cst [0] : vector<4x2x128xf32> to vector<2x128xf32>
    %12 = arith.mulf %8, %11 : vector<2x128xf32>
    %c0_12 = arith.constant 0 : index
    %c0_13 = arith.constant 0 : index
    %c0_14 = arith.constant 0 : index
    %13 = vector.load %arg5[%c0_12, %c0_13, %c0_14] : memref<1x2x128xf32, #tpu.memory_space<vmem>>, vector<1x2x128xf32>
    %14 = vector.shape_cast %13 : vector<1x2x128xf32> to vector<2x128xf32>
    %15 = arith.addf %14, %12 : vector<2x128xf32>
    %c0_15 = arith.constant 0 : index
    %c0_16 = arith.constant 0 : index
    %c0_17 = arith.constant 0 : index
    %16 = vector.load %arg5[%c0_15, %c0_16, %c0_17] : memref<1x2x128xf32, #tpu.memory_space<vmem>>, vector<1x2x128xf32>
    %17 = vector.shape_cast %16 : vector<1x2x128xf32> to vector<2x128xf32>
    %18 = vector.shape_cast %15 : vector<2x128xf32> to vector<1x2x128xf32>
    tpu.vector_store %arg5[%c0_15, %c0_16, %c0_17], %18 {strides = array<i32>} : memref<1x2x128xf32, #tpu.memory_space<vmem>>, vector<1x2x128xf32>,
    return
  }
  func.func @transform_0(%arg0: i32, %arg1: i32) -> (i32, i32, i32, i32) {
    %c0_i32 = arith.constant 0 : i32
    %c0_i32_0 = arith.constant 0 : i32
    %c0_i32_1 = arith.constant 0 : i32
    return %arg0, %c0_i32, %arg1, %c0_i32_0 : i32, i32, i32, i32
  }
  func.func @transform_1(%arg0: i32, %arg1: i32) -> (i32, i32, i32, i32) {
    %c0_i32 = arith.constant 0 : i32
    %c0_i32_0 = arith.constant 0 : i32
    %c0_i32_1 = arith.constant 0 : i32
    return %arg0, %c0_i32, %arg1, %c0_i32_0 : i32, i32, i32, i32
  }
  func.func @transform_2(%arg0: i32, %arg1: i32) -> (i32, i32, i32, i32) {
    %c0_i32 = arith.constant 0 : i32
    %c0_i32_0 = arith.constant 0 : i32
    %c0_i32_1 = arith.constant 0 : i32
    return %arg0, %c0_i32, %arg1, %c0_i32_0 : i32, i32, i32, i32
  }
  func.func @transform_3(%arg0: i32, %arg1: i32) -> (i32, i32, i32) {
    %c0_i32 = arith.constant 0 : i32
    %c0_i32_0 = arith.constant 0 : i32
    %c0_i32_1 = arith.constant 0 : i32
    return %arg0, %c0_i32, %c0_i32_0 : i32, i32, i32
  }
}

</mosaic_0001>

<llo_original>
// kernel: tpu_custom_call.1
$region0: #{tpu_custom_call.1}
  #allocation0 [shape = 'u32[]', space=smem, size = 0x4, offset = 0x4, fixed_abs, tag = 'smem constant byte address 0x4 - core index']
  #allocation1 [shape = 'u32[72,128]{1,0:T(1,128)}', space=vmem, size = 0x9000, scoped, tag = 'internal scratch']
  %s0 = inlined_call_operand.hbm [shape: f32[2,4,2,128], index: 0, kind: input, shape index: {}]
  %s1 = inlined_call_operand.hbm [shape: f32[2,4,2,128], index: 1, kind: input, shape index: {}]
  %s2 = inlined_call_operand.hbm [shape: f32[2,1,2,128], index: 2, kind: input, shape index: {}]
  %s3 = inlined_call_operand.hbm [shape: f32[2,2,128], index: 3, kind: output, shape index: {}]
  %s4 = sld [smem:[#allocation0]]
  $region61: #{tpu_custom_call.1} parent=0
    _
  %s6 = ssub.s32 1, %s4
  %s7 = scalar_select 0, %s6, %s4
  $region1: #{tpu_custom_call.1} parent=0
    #allocation2 [shape = 'u8[8192]{0}', space=vmem, size = 0x2000, scoped, tag = 'input window, operand 0']
    #allocation3 [shape = 's32[2]{0}', space=sflag, size = 0x8, scoped, tag = 'scoped memory for tpu_custom_call.1']
    #allocation4 [shape = 's32[2]{0}', space=sflag, size = 0x8, scoped, tag = 'scoped memory for tpu_custom_call.1']
    #allocation5 [shape = 'u8[8192]{0}', space=vmem, size = 0x2000, scoped, tag = 'input window, operand 1']
    #allocation6 [shape = 's32[2]{0}', space=sflag, size = 0x8, scoped, tag = 'scoped memory for tpu_custom_call.1']
    #allocation7 [shape = 'u8[2048]{0}', space=vmem, size = 0x800, scoped, tag = 'input window, operand 2']
    #allocation8 [shape = 'u8[2048]{0}', space=vmem, size = 0x800, scoped, tag = 'output window, operand 0']
    %8 = vsyncpa [#allocation3], 0
    %s9 = scalar_lea.sflag [#allocation3], 1
    %10 = vsyncpa %s9, 0
    %11 = vsyncpa [#allocation6], 0
    %s12 = scalar_lea.sflag [#allocation6], 1
    %13 = vsyncpa %s12, 0
    %14 = vsyncpa [#allocation4], 0
    %s15 = scalar_lea.sflag [#allocation4], 1
    %16 = vsyncpa %s15, 0
    loop: start=0, step=1, limit=4
    $region2: #{tpu_custom_call.1} parent=1 // loop_pre_header
      _
    $region3: #{tpu_custom_call.1} parent=1 // loop_header
      %s18 = sphi 0, %s22
      %p19 = scmp.ge.s32.totalorder %s18, 4
      %s25 = sphi 0, %s37
      %s26 = sphi 0, %s33
      %s27 = sphi 0, %s25
      %s28 = sphi 0, %s26
      %s29 = sphi 0, %s27
      %s30 = sphi 0, %s28
      %s42 = sphi 0, %s44
      %s45 = sphi 0, %s42
      %s46 = sphi 0, %s45
      %s62 = sphi 0, %s46
      %s70 = sphi 0, %s72
      %s73 = sphi 0, %s70
      %s74 = sphi 0, %s73
      %s90 = sphi 0, %s74
      %s98 = sphi 0, %s100
      %s101 = sphi 0, %s98
      %s102 = sphi 0, %s101
      %s118 = sphi 0, %s102
      %s124 = sphi 0, %s126
      %s127 = sphi 0, %s124
      %s128 = sphi 0, %s127
      %s144 = sphi 0, %s128
    $region4: #{tpu_custom_call.1} parent=1 // loop_header_branch
      %21 = sbr.rel (%p19) target = $region8
    $region5: #{tpu_custom_call.1} parent=1 // loop_body
      %s23 = ssub.s32 %s18, 1
      %s24 = ssub.s32 %s18, 2
      %s31 = sadd.s32 1, %s26
      %p32 = scmp.ge.s32.totalorder %s31, 1
      %s33 = scalar_select %p32, 0, %s31
      %s34 = sadd.s32 1, %s25
      %s35 = scalar_select %p32, %s34, %s25
      %p36 = scmp.ge.s32.totalorder %s35, 2
      %s37 = scalar_select %p36, 0, %s35
      %s38 = ssub.s32 %s25, %s37
      %s39 = ssub.s32 %s26, %s33
      %s40 = sor.u32 %s38, %s39
      %p41 = scmp.eq.s32.totalorder %s40, 0
      %s43 = sadd.s32 %s42, 1
      %s44 = scalar_select %p41, %s42, %s43
      %p47 = pneg %p41
      %p48 = scmp.eq.s32.totalorder %s18, 1
      %p49 = por %p47, %p48
      %p50 = scmp.ne.s32.totalorder %s42, %s45
      %p51 = scmp.eq.s32.totalorder %s18, 0
      %p52 = por %p50, %p51
      %p53 = scmp.ne.s32.totalorder %s42, %s45
      %p54 = scmp.eq.s32.totalorder %s23, 1
      %p55 = por %p53, %p54
      %p56 = scmp.ne.s32.totalorder %s45, %s46
      %p57 = scmp.eq.s32.totalorder %s23, 0
      %p58 = por %p56, %p57
      %p59 = scmp.ne.s32.totalorder %s45, %s46
      %p60 = scmp.eq.s32.totalorder %s24, 1
      %p61 = por %p59, %p60
      %p63 = scmp.ne.s32.totalorder %s46, %s62
      %p64 = scmp.eq.s32.totalorder %s24, 0
      %p65 = por %p63, %p64
      %s66 = ssub.s32 %s25, %s37
      %s67 = ssub.s32 %s26, %s33
      %s68 = sor.u32 %s66, %s67
      %p69 = scmp.eq.s32.totalorder %s68, 0
      %s71 = sadd.s32 %s70, 1
      %s72 = scalar_select %p69, %s70, %s71
      %p75 = pneg %p69
      %p76 = scmp.eq.s32.totalorder %s18, 1
      %p77 = por %p75, %p76
      %p78 = scmp.ne.s32.totalorder %s70, %s73
      %p79 = scmp.eq.s32.totalorder %s18, 0
      %p80 = por %p78, %p79
      %p81 = scmp.ne.s32.totalorder %s70, %s73
      %p82 = scmp.eq.s32.totalorder %s23, 1
      %p83 = por %p81, %p82
      %p84 = scmp.ne.s32.totalorder %s73, %s74
      %p85 = scmp.eq.s32.totalorder %s23, 0
      %p86 = por %p84, %p85
      %p87 = scmp.ne.s32.totalorder %s73, %s74
      %p88 = scmp.eq.s32.totalorder %s24, 1
      %p89 = por %p87, %p88
      %p91 = scmp.ne.s32.totalorder %s74, %s90
      %p92 = scmp.eq.s32.totalorder %s24, 0
      %p93 = por %p91, %p92
      %s94 = ssub.s32 %s25, %s37
      %s95 = ssub.s32 %s26, %s33
      %s96 = sor.u32 %s94, %s95
      %p97 = scmp.eq.s32.totalorder %s96, 0
      %s99 = sadd.s32 %s98, 1
      %s100 = scalar_select %p97, %s98, %s99
      %p103 = pneg %p97
      %p104 = scmp.eq.s32.totalorder %s18, 1
      %p105 = por %p103, %p104
      %p106 = scmp.ne.s32.totalorder %s98, %s101
      %p107 = scmp.eq.s32.totalorder %s18, 0
      %p108 = por %p106, %p107
      %p109 = scmp.ne.s32.totalorder %s98, %s101
      %p110 = scmp.eq.s32.totalorder %s23, 1
      %p111 = por %p109, %p110
      %p112 = scmp.ne.s32.totalorder %s101, %s102
      %p113 = scmp.eq.s32.totalorder %s23, 0
      %p114 = por %p112, %p113
      %p115 = scmp.ne.s32.totalorder %s101, %s102
      %p116 = scmp.eq.s32.totalorder %s24, 1
      %p117 = por %p115, %p116
      %p119 = scmp.ne.s32.totalorder %s102, %s118
      %p120 = scmp.eq.s32.totalorder %s24, 0
      %p121 = por %p119, %p120
      %s122 = ssub.s32 %s25, %s37
      %p123 = scmp.eq.s32.totalorder %s122, 0
      %s125 = sadd.s32 %s124, 1
      %s126 = scalar_select %p123, %s124, %s125
      %p129 = pneg %p123
      %p130 = scmp.eq.s32.totalorder %s18, 1
      %p131 = por %p129, %p130
      %p132 = scmp.ne.s32.totalorder %s124, %s127
      %p133 = scmp.eq.s32.totalorder %s18, 0
      %p134 = por %p132, %p133
      %p135 = scmp.ne.s32.totalorder %s124, %s127
      %p136 = scmp.eq.s32.totalorder %s23, 1
      %p137 = por %p135, %p136
      %p138 = scmp.ne.s32.totalorder %s127, %s128
      %p139 = scmp.eq.s32.totalorder %s23, 0
      %p140 = por %p138, %p139
      %p141 = scmp.ne.s32.totalorder %s127, %s128
      %p142 = scmp.eq.s32.totalorder %s24, 1
      %p143 = por %p141, %p142
      %p145 = scmp.ne.s32.totalorder %s128, %s144
      %p146 = scmp.eq.s32.totalorder %s24, 0
      %p147 = por %p145, %p146
      %p148 = scmp.le.s32.totalorder 1, %s18
      %p149 = scmp.lt.s32.totalorder %s18, 3
      %p150 = pnand %p148, %p149
      %p151 = pneg %p150
      // Predicated region
      $region9: #{tpu_custom_call.1} parent=5 // pred_check
        _
      $region10: #{tpu_custom_call.1} parent=5 // pred_check_branch
        %153 = sbr.rel (%p150) target = $region12
      $region11: #{tpu_custom_call.1} parent=5 // pred_region
        %s154 = ssub.s32 %s18, 1
      $region12: #{tpu_custom_call.1} parent=5 // pred_fallthru
        _
      %p155 = scmp.lt.s32.totalorder %s18, 2
      // Predicated region
      $region13: #{tpu_custom_call.1} parent=5 // pred_check
        %p156 = pneg %p155
      $region14: #{tpu_custom_call.1} parent=5 // pred_check_branch
        %158 = sbr.rel (%p156) target = $region16
      $region15: #{tpu_custom_call.1} parent=5 // pred_region
        // Predicated region
        $region17: #{tpu_custom_call.1} parent=15 // pred_check
          %p159 = pneg %p52
        $region18: #{tpu_custom_call.1} parent=15 // pred_check_branch
          %161 = sbr.rel (%p159) target = $region20
        $region19: #{tpu_custom_call.1} parent=15 // pred_region
          %s162 = sand.u32 %s42, 1
          %s163 = scalar_lea.sflag [#allocation3], %s162
          %s164 = sand.u32 %s42, 1
          %s165 = smul.addr %s164, 8
          %s166 = scalar_lea.vmem [#allocation2], %s165
          %168 = vsyncadd %s163, 0
          %s169 = smul.addr %s25, 4
          %s170 = sadd.s32 %s26, %s169
          %s171 = smul.addr %s170, 2
          %s172 = scalar_lea.hbm %s0, %s171
          %s173 = sshll.u32 %s172, 4
          %s174 = int_to_ptr.hbm [resolvable:$true] %s173
          %s175 = sshll.u32 %s166, 4
          %s176 = int_to_ptr.vmem [resolvable:$true] %s175
          %181 = dma.hbm_to_vmem [thread:$0]  %s174, 128, %s176, %s163, 32, 32, 2
        $region20: #{tpu_custom_call.1} parent=15 // pred_fallthru
          _
        // Predicated region
        $region21: #{tpu_custom_call.1} parent=15 // pred_check
          %p182 = pneg %p80
        $region22: #{tpu_custom_call.1} parent=15 // pred_check_branch
          %184 = sbr.rel (%p182) target = $region24
        $region23: #{tpu_custom_call.1} parent=15 // pred_region
          %s185 = sand.u32 %s18, 1
          %s186 = scalar_lea.sflag [#allocation6], %s185
          %s187 = sand.u32 %s70, 1
          %s188 = smul.addr %s187, 8
          %s189 = scalar_lea.vmem [#allocation5], %s188
          %191 = vsyncadd %s186, 0
          %s192 = smul.addr %s25, 4
          %s193 = sadd.s32 %s26, %s192
          %s194 = smul.addr %s193, 2
          %s195 = scalar_lea.hbm %s1, %s194
          %s196 = sshll.u32 %s195, 4
          %s197 = int_to_ptr.hbm [resolvable:$true] %s196
          %s198 = sshll.u32 %s189, 4
          %s199 = int_to_ptr.vmem [resolvable:$true] %s198
          %204 = dma.hbm_to_vmem [thread:$0]  %s197, 128, %s199, %s186, 32, 32, 2
        $region24: #{tpu_custom_call.1} parent=15 // pred_fallthru
          _
        // Predicated region
        $region25: #{tpu_custom_call.1} parent=15 // pred_check
          %p205 = pneg %p108
        $region26: #{tpu_custom_call.1} parent=15 // pred_check_branch
          %207 = sbr.rel (%p205) target = $region28
        $region27: #{tpu_custom_call.1} parent=15 // pred_region
          %s208 = sand.u32 %s18, 1
          %s209 = scalar_lea.sflag [#allocation6], %s208
          %s210 = sand.u32 %s98, 1
          %s211 = smul.addr %s210, 2
          %s212 = scalar_lea.vmem [#allocation7], %s211
          %214 = vsyncadd %s209, 0
          %s215 = sadd.s32 %s26, %s25
          %s216 = smul.addr %s215, 2
          %s217 = scalar_lea.hbm %s2, %s216
          %s219 = sshll.u32 %s217, 4
          %s220 = int_to_ptr.hbm [resolvable:$true] %s219
          %s221 = sshll.u32 %s212, 4
          %s222 = int_to_ptr.vmem [resolvable:$true] %s221
          %224 = dma.hbm_to_vmem [thread:$0]  %s220, 32, %s222, %s209
        $region28: #{tpu_custom_call.1} parent=15 // pred_fallthru
          _
      $region16: #{tpu_custom_call.1} parent=5 // pred_fallthru
        _
      %p225 = scmp.le.s32.totalorder 1, %s18
      %p226 = scmp.lt.s32.totalorder %s18, 3
      %p227 = pnand %p225, %p226
      %p228 = pneg %p227
      // Predicated region
      $region29: #{tpu_custom_call.1} parent=5 // pred_check
        _
      $region30: #{tpu_custom_call.1} parent=5 // pred_check_branch
        %230 = sbr.rel (%p227) target = $region32
      $region31: #{tpu_custom_call.1} parent=5 // pred_region
        %s231 = ssub.s32 %s18, 1
        %s232 = sand.u32 %s45, 1
        %s233 = scalar_lea.sflag [#allocation3], %s232
        %s234 = sand.u32 %s45, 1
        %s235 = smul.addr %s234, 8
        %s236 = scalar_lea.vmem [#allocation2], %s235
        // Predicated region
        $region33: #{tpu_custom_call.1} parent=31 // pred_check
          %p237 = pneg %p58
        $region34: #{tpu_custom_call.1} parent=31 // pred_check_branch
          %239 = sbr.rel (%p237) target = $region36
        $region35: #{tpu_custom_call.1} parent=31 // pred_region
          %241 = dma.done %s233, 128
        $region36: #{tpu_custom_call.1} parent=31 // pred_fallthru
          _
        %s242 = sand.u32 %s23, 1
        %s243 = scalar_lea.sflag [#allocation6], %s242
        %s244 = sand.u32 %s73, 1
        %s245 = smul.addr %s244, 8
        %s246 = scalar_lea.vmem [#allocation5], %s245
        // Predicated region
        $region37: #{tpu_custom_call.1} parent=31 // pred_check
          %p247 = pneg %p86
        $region38: #{tpu_custom_call.1} parent=31 // pred_check_branch
          %249 = sbr.rel (%p247) target = $region40
        $region39: #{tpu_custom_call.1} parent=31 // pred_region
          %251 = dma.done %s243, 128
        $region40: #{tpu_custom_call.1} parent=31 // pred_fallthru
          _
        %s252 = sand.u32 %s23, 1
        %s253 = scalar_lea.sflag [#allocation6], %s252
        %s254 = sand.u32 %s101, 1
        %s255 = smul.addr %s254, 2
        %s256 = scalar_lea.vmem [#allocation7], %s255
        // Predicated region
        $region41: #{tpu_custom_call.1} parent=31 // pred_check
          %p257 = pneg %p114
        $region42: #{tpu_custom_call.1} parent=31 // pred_check_branch
          %259 = sbr.rel (%p257) target = $region44
        $region43: #{tpu_custom_call.1} parent=31 // pred_region
          %261 = dma.done %s253, 32
        $region44: #{tpu_custom_call.1} parent=31 // pred_fallthru
          _
        %s262 = sand.u32 %s45, 1
        %s263 = scalar_lea.sflag [#allocation3], %s262
        %s264 = sand.u32 %s45, 1
        %s265 = smul.addr %s264, 8
        %s266 = scalar_lea.vmem [#allocation2], %s265
        %p267 = pneg %p58
        %p268 = pneg %p55
        %s269 = sand.u32 %s23, 1
        %s270 = scalar_lea.sflag [#allocation6], %s269
        %s271 = sand.u32 %s73, 1
        %s272 = smul.addr %s271, 8
        %s273 = scalar_lea.vmem [#allocation5], %s272
        %p274 = pneg %p86
        %p275 = pneg %p83
        %s276 = sand.u32 %s23, 1
        %s277 = scalar_lea.sflag [#allocation6], %s276
        %s278 = sand.u32 %s101, 1
        %s279 = smul.addr %s278, 2
        %s280 = scalar_lea.vmem [#allocation7], %s279
        %p281 = pneg %p114
        %p282 = pneg %p111
        %p283 = pneg %p140
        %p284 = pneg %p137
        %s285 = sand.u32 %s127, 1
        %s286 = scalar_lea.sflag [#allocation4], %s285
        %s287 = sand.u32 %s127, 1
        %s288 = smul.addr %s287, 2
        %s289 = scalar_lea.vmem [#allocation8], %s288
        %p290 = scmp.eq.s32.totalorder %s28, 0
        // Predicated region
        $region45: #{tpu_custom_call.1} parent=31 // pred_check
          %p291 = pneg %p290
        $region46: #{tpu_custom_call.1} parent=31 // pred_check_branch
          %293 = sbr.rel (%p291) target = $region48
        $region47: #{tpu_custom_call.1} parent=31 // pred_region
          %294 = vst [vmem:[%s289] sm:$0x3] 0.0
        $region48: #{tpu_custom_call.1} parent=31 // pred_fallthru
          _
        %v295 = vld [vmem:[%s236] sm:$0x3]
        %v296 = vld [vmem:[%s236 + $0x2] sm:$0x3]
        %v297 = vld [vmem:[%s236 + $0x4] sm:$0x3]
        %v298 = vld [vmem:[%s236 + $0x6] sm:$0x3]
        %v299 = vld [vmem:[%s246] sm:$0x3]
        %v300 = vld [vmem:[%s246 + $0x2] sm:$0x3]
        %v301 = vld [vmem:[%s246 + $0x4] sm:$0x3]
        %v302 = vld [vmem:[%s246 + $0x6] sm:$0x3]
        %v303 = vld [vmem:[%s256] sm:$0x3]
        %v304 = vsub.f32 %v295, %v299
        %v305 = vsub.f32 %v296, %v300
        %v306 = vsub.f32 %v297, %v301
        %v307 = vsub.f32 %v298, %v302
        %v308 = vand.u32 2147483647, %v304
        %v309 = vand.u32 2147483647, %v305
        %v310 = vand.u32 2147483647, %v306
        %v311 = vand.u32 2147483647, %v307
        %vm312 = vcmask 1041408
        %v313 = vsel %vm312, %v308, 0.0
        %v314 = vsel %vm312, %v309, 0.0
        %v315 = vadd.f32 %v313, %v314
        %v316 = vsel %vm312, %v310, 0.0
        %v317 = vadd.f32 %v315, %v316
        %v318 = vsel %vm312, %v311, 0.0
        %v319 = vadd.f32 %v317, %v318
        %v320 = vmul.f32 %v303, %v319
        %v321 = vld [vmem:[%s289] sm:$0x3]
        %v322 = vadd.f32 %v321, %v320
        %323 = vst [vmem:[%s289] sm:$0x3] %v322
        %s324 = sand.u32 %s127, 1
        %s325 = scalar_lea.sflag [#allocation4], %s324
        %s326 = sand.u32 %s127, 1
        %s327 = smul.addr %s326, 2
        %s328 = scalar_lea.vmem [#allocation8], %s327
        // Predicated region
        $region49: #{tpu_custom_call.1} parent=31 // pred_check
          %p329 = pneg %p137
        $region50: #{tpu_custom_call.1} parent=31 // pred_check_branch
          %331 = sbr.rel (%p329) target = $region52
        $region51: #{tpu_custom_call.1} parent=31 // pred_region
          %333 = vsyncadd %s325, 0
          %s334 = smul.addr %s27, 2
          %s335 = scalar_lea.hbm %s3, %s334
          %s337 = sshll.u32 %s328, 4
          %s338 = int_to_ptr.vmem [resolvable:$true] %s337
          %s339 = sshll.u32 %s335, 4
          %s340 = int_to_ptr.hbm [resolvable:$true] %s339
          %342 = dma.vmem_to_hbm [thread:$0]  %s338, 32, %s340, %s325
        $region52: #{tpu_custom_call.1} parent=31 // pred_fallthru
          _
      $region32: #{tpu_custom_call.1} parent=5 // pred_fallthru
        _
      %p343 = scmp.le.s32.totalorder 2, %s18
      // Predicated region
      $region53: #{tpu_custom_call.1} parent=5 // pred_check
        %p344 = pneg %p343
      $region54: #{tpu_custom_call.1} parent=5 // pred_check_branch
        %346 = sbr.rel (%p344) target = $region56
      $region55: #{tpu_custom_call.1} parent=5 // pred_region
        %s347 = ssub.s32 %s18, 2
        // Predicated region
        $region57: #{tpu_custom_call.1} parent=55 // pred_check
          %p348 = pneg %p143
        $region58: #{tpu_custom_call.1} parent=55 // pred_check_branch
          %350 = sbr.rel (%p348) target = $region60
        $region59: #{tpu_custom_call.1} parent=55 // pred_region
          %s351 = sand.u32 %s128, 1
          %s352 = scalar_lea.sflag [#allocation4], %s351
          %s353 = sand.u32 %s128, 1
          %s354 = smul.addr %s353, 2
          %s355 = scalar_lea.vmem [#allocation8], %s354
          %357 = dma.done %s352, 32
        $region60: #{tpu_custom_call.1} parent=55 // pred_fallthru
          _
      $region56: #{tpu_custom_call.1} parent=5 // pred_fallthru
        _
    $region6: #{tpu_custom_call.1} parent=1 // loop_footer
      %s22 = sadd.s32 1, %s18
    $region7: #{tpu_custom_call.1} parent=1 // loop_footer_branch
      %17 = sbr.rel target = $region3
    $region8: #{tpu_custom_call.1} parent=1 // loop_exit
      _
    %358 = vsyncpa [#allocation3], 1
    %s359 = scalar_lea.sflag [#allocation3], 1
    %360 = vsyncpa %s359, 1
    %361 = vsyncpa [#allocation6], 1
    %s362 = scalar_lea.sflag [#allocation6], 1
    %363 = vsyncpa %s362, 1
    %364 = vsyncpa [#allocation4], 1
    %s365 = scalar_lea.sflag [#allocation4], 1
    %366 = vsyncpa %s365, 1

</llo_original>
